<compile_context>
chip_gen: v7x
topology: tpu7x:2x2x1
jax: 0.10.0
libtpu: 0.0.40
codegen_flags: <defaults>
</compile_context>

<pallas_src>
import functools

import jax
import jax.numpy as jnp
from jax.experimental import pallas as pl
from jax.experimental.pallas import tpu as pltpu

HIDDEN_LAYERS = [128, 64, 32]
INPUT_SIZE = 32 * 32
OUTPUT_SIZE = 10
LANE = 128
DEFAULT_TILE_B = 2048                 # review: 2048-4096; 2048 keeps f32-stream VMEM safe
_VMEM_LIMIT_BYTES = 32 * 1024 * 1024  # explicit: v5e's scoped default is only 16 MiB
_X_VMEM_BUDGET = 20 * 1024 * 1024     # budget for the double-buffered x tiles


def _round_up(n, m):
    return ((n + m - 1) // m) * m


def _mlp_kernel(x_ref,
                w1_ref, b1_ref,
                w2_ref, b2_ref,
                w3_ref, b3_ref,
                w4_ref, b4_ref,
                o_ref, *, compute_dtype):
    # In-kernel cast to the MXU compute dtype (no separate HBM pass for it).
    x = x_ref[...].astype(compute_dtype)
    # Layer 1: (tb,1024)@(1024,128), f32 accumulate, +bias, ReLU (lane-dense).
    h = jnp.dot(x, w1_ref[...], preferred_element_type=jnp.float32)
    h = jnp.maximum(h + b1_ref[...], 0.0)
    # Layer 2: (tb,128)@(128,128) -- hidden dim 64 zero-padded to 128 lanes.
    h = jnp.dot(h.astype(compute_dtype), w2_ref[...],
                preferred_element_type=jnp.float32)
    h = jnp.maximum(h + b2_ref[...], 0.0)
    # Layer 3: (tb,128)@(128,128) -- hidden dim 32 zero-padded to 128 lanes.
    h = jnp.dot(h.astype(compute_dtype), w3_ref[...],
                preferred_element_type=jnp.float32)
    h = jnp.maximum(h + b3_ref[...], 0.0)
    # Output layer: (tb,128)@(128,10), no activation.  Tiny masked store is OK.
    h = jnp.dot(h.astype(compute_dtype), w4_ref[...],
                preferred_element_type=jnp.float32)
    o_ref[...] = (h + b4_ref[...]).astype(o_ref.dtype)


def neural_net_forward(x, params, *, tile_b=DEFAULT_TILE_B,
                       compute_dtype=jnp.bfloat16):
    """x: any shape with leading batch dim; flattened to (B, INPUT_SIZE)."""
    B = x.shape[0]
    x2d = x.reshape(B, -1)            # metadata-only reshape, no HBM pass
    assert x2d.shape[1] == INPUT_SIZE

    # ---- batch tile selection -------------------------------------------
    tile_b = max(8, (int(tile_b) // 8) * 8)
    # Cap so the grid has >= 2 steps when the batch allows it: feeds both v7x
    # TensorCores and overlaps the x DMA with compute.  Tile stays >= B/2.
    tile_b = min(tile_b, _round_up(-(-B // 2), 8))
    # Keep the double-buffered x tiles within the VMEM budget (x may be f32).
    max_tile = max(8, (_X_VMEM_BUDGET // (2 * INPUT_SIZE * x2d.dtype.itemsize))
                   // 8 * 8)
    tile_b = min(tile_b, max_tile)
    if B <= tile_b:
        tile_b = B                    # one full-batch block (block dim == array dim)
    grid_b = pl.cdiv(B, tile_b)       # ragged last block: OOB reads harmless
                                      # (row-independent math), OOB writes masked

    (w1, b1), (w2, b2), (w3, b3), (w4, b4) = params

    # Zero-pad the narrow hidden dims (64, 32) to 128 lanes; preserves the math.
    w2p = jnp.pad(w2, ((0, 0), (0, LANE - w2.shape[1])))                   # (128,128)
    b2p = jnp.pad(b2, ((0, 0), (0, LANE - b2.shape[1])))                   # (1,128)
    w3p = jnp.pad(w3, ((0, LANE - w3.shape[0]), (0, LANE - w3.shape[1])))  # (128,128)
    b3p = jnp.pad(b3, ((0, 0), (0, LANE - b3.shape[1])))                   # (1,128)
    w4p = jnp.pad(w4, ((0, LANE - w4.shape[0]), (0, 0)))                   # (128,10)

    # Weights in compute dtype (bf16 halves their HBM bytes, native MXU path);
    # biases stay f32 for the VPU add (v5e VPU has no bf16).
    w1c, w2c, w3c, w4c = (w.astype(compute_dtype) for w in (w1, w2p, w3p, w4p))

    weight_operands = (w1c, b1, w2c, b2p, w3c, b3p, w4c, b4)
    const_spec = lambda arr: pl.BlockSpec(arr.shape, lambda i: (0, 0))

    flops = 2 * B * (INPUT_SIZE * LANE + LANE * LANE + LANE * LANE
                     + LANE * OUTPUT_SIZE)
    bytes_accessed = (
        x2d.size * x2d.dtype.itemsize
        + sum(a.size * a.dtype.itemsize for a in weight_operands)
        + B * OUTPUT_SIZE * 4)

    out = pl.pallas_call(
        functools.partial(_mlp_kernel, compute_dtype=compute_dtype),
        out_shape=jax.ShapeDtypeStruct((B, OUTPUT_SIZE), jnp.float32),
        grid=(grid_b,),
        in_specs=[pl.BlockSpec((tile_b, INPUT_SIZE), lambda i: (i, 0))]
                 + [const_spec(a) for a in weight_operands],
        out_specs=pl.BlockSpec((tile_b, OUTPUT_SIZE), lambda i: (i, 0)),
        compiler_params=pltpu.CompilerParams(
            dimension_semantics=("parallel",),
            vmem_limit_bytes=_VMEM_LIMIT_BYTES),
        cost_estimate=pl.CostEstimate(
            flops=flops, transcendentals=0, bytes_accessed=bytes_accessed),
    )(x2d, *weight_operands)

    return out


def init_params(key):
    """Deterministic init mirroring the PyTorch module: xavier_uniform_ for the
    hidden Linear weights, PyTorch-default uniform for the final layer's weight
    and for all biases.  Weights stored pre-transposed as (in, out) so the
    kernel does plain `x @ W + b`."""
    sizes = [INPUT_SIZE] + HIDDEN_LAYERS + [OUTPUT_SIZE]
    params = []
    n_layers = len(sizes) - 1
    for i in range(n_layers):
        fan_in, fan_out = sizes[i], sizes[i + 1]
        key, kw, kb = jax.random.split(key, 3)
        if i < n_layers - 1:
            bound_w = float(jnp.sqrt(6.0 / (fan_in + fan_out)))   # xavier_uniform_
        else:
            bound_w = 1.0 / float(jnp.sqrt(float(fan_in)))        # PyTorch default
        w = jax.random.uniform(kw, (fan_in, fan_out), jnp.float32,
                               minval=-bound_w, maxval=bound_w)
        bound_b = 1.0 / float(jnp.sqrt(float(fan_in)))
        b = jax.random.uniform(kb, (1, fan_out), jnp.float32,
                               minval=-bound_b, maxval=bound_b)
        params.append((w, b))
    return params


def reference_forward(x, params):
    """Pure-JAX f32 reference for sanity checking."""
    h = x.reshape(x.shape[0], -1).astype(jnp.float32)
    for i, (w, b) in enumerate(params):
        h = h @ w + b
        if i < len(params) - 1:
            h = jnp.maximum(h, 0.0)
    return h


if __name__ == "__main__":
    key = jax.random.PRNGKey(0)
    key, kx, kx2 = jax.random.split(key, 3)
    params = init_params(key)

    # Small example input: batch of 2 single-channel 32x32 "images".
    x = jax.random.normal(kx, (2, 1, 32, 32), jnp.float32)
    ref = reference_forward(x, params)

    # 1) f32 compute path: should match the pure-JAX reference tightly.
    out_f32 = jax.block_until_ready(
        neural_net_forward(x, params, compute_dtype=jnp.float32))
    assert out_f32.shape == (2, OUTPUT_SIZE)
    assert jnp.allclose(out_f32, ref, atol=1e-4, rtol=1e-4)

    # 2) Default bf16 compute path (perf config): looser tolerance for bf16
    #    weight/activation rounding.
    out_bf16 = jax.block_until_ready(neural_net_forward(x, params))
    assert out_bf16.shape == (2, OUTPUT_SIZE)
    assert jnp.allclose(out_bf16, ref, atol=5e-2, rtol=5e-2)

    # 3) Exercise the multi-tile grid + ragged (unpadded) last-block path:
    #    B=300 with tile_b=128 -> grid of 3, last block 44 valid of 128 rows.
    xb = jax.random.normal(kx2, (300, 1, 32, 32), jnp.float32)
    refb = reference_forward(xb, params)
    outb = jax.block_until_ready(neural_net_forward(xb, params, tile_b=128))
    assert outb.shape == (300, OUTPUT_SIZE)
    assert jnp.allclose(outb, refb, atol=5e-2, rtol=5e-2)

    print("KERNEL_OK")
</pallas_src>

<mosaic_0001>
module attributes {stable_mosaic.version = 11 : i64} {
  func.func @_mlp_kernel(%arg0: i32, %arg1: memref<2x1024xf32, #tpu.memory_space<vmem>>, %arg2: memref<1024x128xf32, #tpu.memory_space<vmem>>, %arg3: memref<1x128xf32, #tpu.memory_space<vmem>>, %arg4: memref<128x128xf32, #tpu.memory_space<vmem>>, %arg5: memref<1x128xf32, #tpu.memory_space<vmem>>, %arg6: memref<128x128xf32, #tpu.memory_space<vmem>>, %arg7: memref<1x128xf32, #tpu.memory_space<vmem>>, %arg8: memref<128x10xf32, #tpu.memory_space<vmem>>, %arg9: memref<1x10xf32, #tpu.memory_space<vmem>>, %arg10: memref<2x10xf32, #tpu.memory_space<vmem>>) attributes {dimension_semantics = [#tpu.dimension_semantics<parallel>], iteration_bounds = array<i64: 1>, scalar_prefetch = 0 : i64, scratch_operands = 0 : i64, tpu.core_type = #tpu.core_type<tc>, window_params = [{transform_indices = @transform_0, window_bounds = array<i64: 2, 1024>}, {pipeline_mode = #tpu.pipeline_mode<synchronous>, transform_indices = @transform_1, window_bounds = array<i64: 1024, 128>}, {pipeline_mode = #tpu.pipeline_mode<synchronous>, transform_indices = @transform_2, window_bounds = array<i64: 1, 128>}, {pipeline_mode = #tpu.pipeline_mode<synchronous>, transform_indices = @transform_3, window_bounds = array<i64: 128, 128>}, {pipeline_mode = #tpu.pipeline_mode<synchronous>, transform_indices = @transform_4, window_bounds = array<i64: 1, 128>}, {pipeline_mode = #tpu.pipeline_mode<synchronous>, transform_indices = @transform_5, window_bounds = array<i64: 128, 128>}, {pipeline_mode = #tpu.pipeline_mode<synchronous>, transform_indices = @transform_6, window_bounds = array<i64: 1, 128>}, {pipeline_mode = #tpu.pipeline_mode<synchronous>, transform_indices = @transform_7, window_bounds = array<i64: 128, 10>}, {pipeline_mode = #tpu.pipeline_mode<synchronous>, transform_indices = @transform_8, window_bounds = array<i64: 1, 10>}, {transform_indices = @transform_9, window_bounds = array<i64: 2, 10>}]} {
    %c0 = arith.constant 0 : index
    %c0_0 = arith.constant 0 : index
    %0 = vector.load %arg1[%c0, %c0_0] : memref<2x1024xf32, #tpu.memory_space<vmem>>, vector<2x1024xf32>
    %c0_1 = arith.constant 0 : index
    %c0_2 = arith.constant 0 : index
    %1 = vector.load %arg2[%c0_1, %c0_2] : memref<1024x128xf32, #tpu.memory_space<vmem>>, vector<1024x128xf32>
    %cst = arith.constant dense<0.000000e+00> : vector<2x128xf32>
    %2 = tpu.matmul %0, %1, %cst {dimension_numbers = #tpu.dot_dimension_numbers<[1], [0], [0], [1], [0, 0, 1, 1], [], []>} : vector<2x1024xf32>, vector<1024x128xf32>, vector<2x128xf32> -> vector<2x128xf32>
    %c0_3 = arith.constant 0 : index
    %c0_4 = arith.constant 0 : index
    %3 = vector.load %arg3[%c0_3, %c0_4] : memref<1x128xf32, #tpu.memory_space<vmem>>, vector<1x128xf32>
    %4 = vector.broadcast %3 : vector<1x128xf32> to vector<2x128xf32>
    %5 = arith.addf %2, %4 : vector<2x128xf32>
    %cst_5 = arith.constant 0.000000e+00 : f32
    %6 = vector.broadcast %cst_5 : f32 to vector<2x128xf32>
    %7 = arith.maximumf %5, %6 : vector<2x128xf32>
    %c0_6 = arith.constant 0 : index
    %c0_7 = arith.constant 0 : index
    %8 = vector.load %arg4[%c0_6, %c0_7] : memref<128x128xf32, #tpu.memory_space<vmem>>, vector<128x128xf32>
    %cst_8 = arith.constant dense<0.000000e+00> : vector<2x128xf32>
    %9 = tpu.matmul %7, %8, %cst_8 {dimension_numbers = #tpu.dot_dimension_numbers<[1], [0], [0], [1], [0, 0, 1, 1], [], []>} : vector<2x128xf32>, vector<128x128xf32>, vector<2x128xf32> -> vector<2x128xf32>
    %c0_9 = arith.constant 0 : index
    %c0_10 = arith.constant 0 : index
    %10 = vector.load %arg5[%c0_9, %c0_10] : memref<1x128xf32, #tpu.memory_space<vmem>>, vector<1x128xf32>
    %11 = vector.broadcast %10 : vector<1x128xf32> to vector<2x128xf32>
    %12 = arith.addf %9, %11 : vector<2x128xf32>
    %cst_11 = arith.constant 0.000000e+00 : f32
    %13 = vector.broadcast %cst_11 : f32 to vector<2x128xf32>
    %14 = arith.maximumf %12, %13 : vector<2x128xf32>
    %c0_12 = arith.constant 0 : index
    %c0_13 = arith.constant 0 : index
    %15 = vector.load %arg6[%c0_12, %c0_13] : memref<128x128xf32, #tpu.memory_space<vmem>>, vector<128x128xf32>
    %cst_14 = arith.constant dense<0.000000e+00> : vector<2x128xf32>
    %16 = tpu.matmul %14, %15, %cst_14 {dimension_numbers = #tpu.dot_dimension_numbers<[1], [0], [0], [1], [0, 0, 1, 1], [], []>} : vector<2x128xf32>, vector<128x128xf32>, vector<2x128xf32> -> vector<2x128xf32>
    %c0_15 = arith.constant 0 : index
    %c0_16 = arith.constant 0 : index
    %17 = vector.load %arg7[%c0_15, %c0_16] : memref<1x128xf32, #tpu.memory_space<vmem>>, vector<1x128xf32>
    %18 = vector.broadcast %17 : vector<1x128xf32> to vector<2x128xf32>
    %19 = arith.addf %16, %18 : vector<2x128xf32>
    %cst_17 = arith.constant 0.000000e+00 : f32
    %20 = vector.broadcast %cst_17 : f32 to vector<2x128xf32>
    %21 = arith.maximumf %19, %20 : vector<2x128xf32>
    %c0_18 = arith.constant 0 : index
    %c0_19 = arith.constant 0 : index
    %22 = vector.load %arg8[%c0_18, %c0_19] : memref<128x10xf32, #tpu.memory_space<vmem>>, vector<128x10xf32>
    %cst_20 = arith.constant dense<0.000000e+00> : vector<2x10xf32>
    %23 = tpu.matmul %21, %22, %cst_20 {dimension_numbers = #tpu.dot_dimension_numbers<[1], [0], [0], [1], [0, 0, 1, 1], [], []>} : vector<2x128xf32>, vector<128x10xf32>, vector<2x10xf32> -> vector<2x10xf32>
    %c0_21 = arith.constant 0 : index
    %c0_22 = arith.constant 0 : index
    %24 = vector.load %arg9[%c0_21, %c0_22] : memref<1x10xf32, #tpu.memory_space<vmem>>, vector<1x10xf32>
    %25 = vector.broadcast %24 : vector<1x10xf32> to vector<2x10xf32>
    %26 = arith.addf %23, %25 : vector<2x10xf32>
    %c0_23 = arith.constant 0 : index
    %c0_24 = arith.constant 0 : index
    %27 = vector.load %arg10[%c0_23, %c0_24] : memref<2x10xf32, #tpu.memory_space<vmem>>, vector<2x10xf32>
    tpu.vector_store %arg10[%c0_23, %c0_24], %26 {strides = array<i32>} : memref<2x10xf32, #tpu.memory_space<vmem>>, vector<2x10xf32>,
    return
  }
  func.func @transform_0(%arg0: i32) -> (i32, i32) {
    %c0_i32 = arith.constant 0 : i32
    %c0_i32_0 = arith.constant 0 : i32
    return %arg0, %c0_i32 : i32, i32
  }
  func.func @transform_1(%arg0: i32) -> (i32, i32) {
    %c0_i32 = arith.constant 0 : i32
    %c0_i32_0 = arith.constant 0 : i32
    %c0_i32_1 = arith.constant 0 : i32
    return %c0_i32, %c0_i32_0 : i32, i32
  }
  func.func @transform_2(%arg0: i32) -> (i32, i32) {
    %c0_i32 = arith.constant 0 : i32
    %c0_i32_0 = arith.constant 0 : i32
    %c0_i32_1 = arith.constant 0 : i32
    return %c0_i32, %c0_i32_0 : i32, i32
  }
  func.func @transform_3(%arg0: i32) -> (i32, i32) {
    %c0_i32 = arith.constant 0 : i32
    %c0_i32_0 = arith.constant 0 : i32
    %c0_i32_1 = arith.constant 0 : i32
    return %c0_i32, %c0_i32_0 : i32, i32
  }
  func.func @transform_4(%arg0: i32) -> (i32, i32) {
    %c0_i32 = arith.constant 0 : i32
    %c0_i32_0 = arith.constant 0 : i32
    %c0_i32_1 = arith.constant 0 : i32
    return %c0_i32, %c0_i32_0 : i32, i32
  }
  func.func @transform_5(%arg0: i32) -> (i32, i32) {
    %c0_i32 = arith.constant 0 : i32
    %c0_i32_0 = arith.constant 0 : i32
    %c0_i32_1 = arith.constant 0 : i32
    return %c0_i32, %c0_i32_0 : i32, i32
  }
  func.func @transform_6(%arg0: i32) -> (i32, i32) {
    %c0_i32 = arith.constant 0 : i32
    %c0_i32_0 = arith.constant 0 : i32
    %c0_i32_1 = arith.constant 0 : i32
    return %c0_i32, %c0_i32_0 : i32, i32
  }
  func.func @transform_7(%arg0: i32) -> (i32, i32) {
    %c0_i32 = arith.constant 0 : i32
    %c0_i32_0 = arith.constant 0 : i32
    %c0_i32_1 = arith.constant 0 : i32
    return %c0_i32, %c0_i32_0 : i32, i32
  }
  func.func @transform_8(%arg0: i32) -> (i32, i32) {
    %c0_i32 = arith.constant 0 : i32
    %c0_i32_0 = arith.constant 0 : i32
    %c0_i32_1 = arith.constant 0 : i32
    return %c0_i32, %c0_i32_0 : i32, i32
  }
  func.func @transform_9(%arg0: i32) -> (i32, i32) {
    %c0_i32 = arith.constant 0 : i32
    %c0_i32_0 = arith.constant 0 : i32
    return %arg0, %c0_i32 : i32, i32
  }
}

</mosaic_0001>

<llo_original>
// kernel: tpu_custom_call.1
$region0: #{tpu_custom_call.1}
  #allocation0 [shape = 'u32[]', space=smem, size = 0x4, offset = 0x4, fixed_abs, tag = 'smem constant byte address 0x4 - core index']
  #allocation1 [shape = 'u32[144,128]{1,0:T(1,128)}', space=vmem, size = 0x12000, scoped, tag = 'internal scratch']
  %s0 = inlined_call_operand.vmem [shape: f32[2,1024], index: 0, kind: input, shape index: {}]
  %s1 = inlined_call_operand.hbm [shape: f32[1024,128], index: 1, kind: input, shape index: {}]
  %s2 = inlined_call_operand.vmem [shape: f32[1,128], index: 2, kind: input, shape index: {}]
  %s3 = inlined_call_operand.vmem [shape: f32[128,128], index: 3, kind: input, shape index: {}]
  %s4 = inlined_call_operand.vmem [shape: f32[1,128], index: 4, kind: input, shape index: {}]
  %s5 = inlined_call_operand.hbm [shape: f32[128,128], index: 5, kind: input, shape index: {}]
  %s6 = inlined_call_operand.vmem [shape: f32[1,128], index: 6, kind: input, shape index: {}]
  %s7 = inlined_call_operand.vmem [shape: f32[128,10], index: 7, kind: input, shape index: {}]
  %s8 = inlined_call_operand.vmem [shape: f32[1,10], index: 8, kind: input, shape index: {}]
  %s9 = inlined_call_operand.hbm [shape: f32[2,10], index: 9, kind: output, shape index: {}]
  %s10 = sld [smem:[#allocation0]]
  $region54: #{tpu_custom_call.1} parent=0
    _
  %s12 = ssub.s32 1, %s10
  %s13 = scalar_select 0, %s12, %s10
  $region1: #{tpu_custom_call.1} parent=0
    #allocation2 [shape = 'u8[524288]{0}', space=vmem, size = 0x80000, scoped, tag = 'input window, operand 1, single buffered']
    #allocation3 [shape = 's32[1]{0}', space=sflag, size = 0x4, scoped, tag = 'scoped memory for tpu_custom_call.1']
    #allocation4 [shape = 's32[1]{0}', space=sflag, size = 0x4, scoped, tag = 'scoped memory for tpu_custom_call.1']
    #allocation5 [shape = 'u8[65536]{0}', space=vmem, size = 0x10000, scoped, tag = 'input window, operand 5, single buffered']
    #allocation6 [shape = 's32[1]{0}', space=sflag, size = 0x4, scoped, tag = 'scoped memory for tpu_custom_call.1']
    #allocation7 [shape = 'u8[1024]{0}', space=vmem, size = 0x400, scoped, tag = 'output window, operand 0, single buffered']
    %14 = vsyncpa [#allocation3], 0
    %15 = vsyncpa [#allocation6], 0
    %16 = vsyncpa [#allocation4], 0
    // Predicated region
    $region2: #{tpu_custom_call.1} parent=1 // pred_check
      _
    $region3: #{tpu_custom_call.1} parent=1 // pred_check_branch
      %18 = sbr.rel (0) target = $region5
    $region4: #{tpu_custom_call.1} parent=1 // pred_region
      _
    $region5: #{tpu_custom_call.1} parent=1 // pred_fallthru
      _
    // Predicated region
    $region6: #{tpu_custom_call.1} parent=1 // pred_check
      _
    $region7: #{tpu_custom_call.1} parent=1 // pred_check_branch
      %20 = sbr.rel (0) target = $region9
    $region8: #{tpu_custom_call.1} parent=1 // pred_region
      %s22 = ssub.s32 16384, 16384
      %23 = vsyncadd [#allocation3], %s22
      %s24 = sshll.u32 [#allocation2], 4
      %s25 = int_to_ptr.vmem [resolvable:$true] %s24
      %30 = dma.hbm_to_vmem [thread:$0]  %s1, 16384, %s25, [#allocation3], 128, 128, 8
    $region9: #{tpu_custom_call.1} parent=1 // pred_fallthru
      _
    // Predicated region
    $region10: #{tpu_custom_call.1} parent=1 // pred_check
      _
    $region11: #{tpu_custom_call.1} parent=1 // pred_check_branch
      %32 = sbr.rel (0) target = $region13
    $region12: #{tpu_custom_call.1} parent=1 // pred_region
      _
    $region13: #{tpu_custom_call.1} parent=1 // pred_fallthru
      _
    // Predicated region
    $region14: #{tpu_custom_call.1} parent=1 // pred_check
      _
    $region15: #{tpu_custom_call.1} parent=1 // pred_check_branch
      %34 = sbr.rel (0) target = $region17
    $region16: #{tpu_custom_call.1} parent=1 // pred_region
      _
    $region17: #{tpu_custom_call.1} parent=1 // pred_fallthru
      _
    // Predicated region
    $region18: #{tpu_custom_call.1} parent=1 // pred_check
      _
    $region19: #{tpu_custom_call.1} parent=1 // pred_check_branch
      %36 = sbr.rel (0) target = $region21
    $region20: #{tpu_custom_call.1} parent=1 // pred_region
      _
    $region21: #{tpu_custom_call.1} parent=1 // pred_fallthru
      _
    // Predicated region
    $region22: #{tpu_custom_call.1} parent=1 // pred_check
      _
    $region23: #{tpu_custom_call.1} parent=1 // pred_check_branch
      %38 = sbr.rel (0) target = $region25
    $region24: #{tpu_custom_call.1} parent=1 // pred_region
      %s40 = ssub.s32 2048, 2048
      %41 = vsyncadd [#allocation6], %s40
      %s42 = sshll.u32 [#allocation5], 4
      %s43 = int_to_ptr.vmem [resolvable:$true] %s42
      %48 = dma.hbm_to_vmem [thread:$0]  %s5, 2048, %s43, [#allocation6], 128, 128, 8
    $region25: #{tpu_custom_call.1} parent=1 // pred_fallthru
      _
    // Predicated region
    $region26: #{tpu_custom_call.1} parent=1 // pred_check
      _
    $region27: #{tpu_custom_call.1} parent=1 // pred_check_branch
      %50 = sbr.rel (0) target = $region29
    $region28: #{tpu_custom_call.1} parent=1 // pred_region
      _
    $region29: #{tpu_custom_call.1} parent=1 // pred_fallthru
      _
    // Predicated region
    $region30: #{tpu_custom_call.1} parent=1 // pred_check
      _
    $region31: #{tpu_custom_call.1} parent=1 // pred_check_branch
      %52 = sbr.rel (0) target = $region33
    $region32: #{tpu_custom_call.1} parent=1 // pred_region
      _
    $region33: #{tpu_custom_call.1} parent=1 // pred_fallthru
      _
    // Predicated region
    $region34: #{tpu_custom_call.1} parent=1 // pred_check
      _
    $region35: #{tpu_custom_call.1} parent=1 // pred_check_branch
      %54 = sbr.rel (0) target = $region37
    $region36: #{tpu_custom_call.1} parent=1 // pred_region
      _
    $region37: #{tpu_custom_call.1} parent=1 // pred_fallthru
      _
    // Predicated region
    $region38: #{tpu_custom_call.1} parent=1 // pred_check
      _
    $region39: #{tpu_custom_call.1} parent=1 // pred_check_branch
      %56 = sbr.rel (0) target = $region41
    $region40: #{tpu_custom_call.1} parent=1 // pred_region
      %57 = dma.done [#allocation3], 16384
    $region41: #{tpu_custom_call.1} parent=1 // pred_fallthru
      _
    // Predicated region
    $region42: #{tpu_custom_call.1} parent=1 // pred_check
      _
    $region43: #{tpu_custom_call.1} parent=1 // pred_check_branch
      %59 = sbr.rel (0) target = $region45
    $region44: #{tpu_custom_call.1} parent=1 // pred_region
      %60 = dma.done [#allocation6], 2048
    $region45: #{tpu_custom_call.1} parent=1 // pred_fallthru
      _
    %v61 = vld [vmem:[%s0] sm:$0xff]
    %v62 = vld [vmem:[%s0 + $0x8] sm:$0xff]
    %v63 = vld [vmem:[#allocation2] sm:$0xff]
    %v64 = vld [vmem:[#allocation2 + $0x8] sm:$0xff]
    %v65 = vld [vmem:[#allocation2 + $0x10] sm:$0xff]
    %v66 = vld [vmem:[#allocation2 + $0x18] sm:$0xff]
    %v67 = vld [vmem:[#allocation2 + $0x20] sm:$0xff]
    %v68 = vld [vmem:[#allocation2 + $0x28] sm:$0xff]
    %v69 = vld [vmem:[#allocation2 + $0x30] sm:$0xff]
    %v70 = vld [vmem:[#allocation2 + $0x38] sm:$0xff]
    %v71 = vld [vmem:[#allocation2 + $0x40] sm:$0xff]
    %v72 = vld [vmem:[#allocation2 + $0x48] sm:$0xff]
    %v73 = vld [vmem:[#allocation2 + $0x50] sm:$0xff]
    %v74 = vld [vmem:[#allocation2 + $0x58] sm:$0xff]
    %v75 = vld [vmem:[#allocation2 + $0x60] sm:$0xff]
    %v76 = vld [vmem:[#allocation2 + $0x68] sm:$0xff]
    %v77 = vld [vmem:[#allocation2 + $0x70] sm:$0xff]
    %v78 = vld [vmem:[#allocation2 + $0x78] sm:$0xff]
    %v79 = vld [vmem:[#allocation2 + $0x80] sm:$0xff]
    %v80 = vld [vmem:[#allocation2 + $0x88] sm:$0xff]
    %v81 = vld [vmem:[#allocation2 + $0x90] sm:$0xff]
    %v82 = vld [vmem:[#allocation2 + $0x98] sm:$0xff]
    %v83 = vld [vmem:[#allocation2 + $0xa0] sm:$0xff]
    %v84 = vld [vmem:[#allocation2 + $0xa8] sm:$0xff]
    %v85 = vld [vmem:[#allocation2 + $0xb0] sm:$0xff]
    %v86 = vld [vmem:[#allocation2 + $0xb8] sm:$0xff]
    %v87 = vld [vmem:[#allocation2 + $0xc0] sm:$0xff]
    %v88 = vld [vmem:[#allocation2 + $0xc8] sm:$0xff]
    %v89 = vld [vmem:[#allocation2 + $0xd0] sm:$0xff]
    %v90 = vld [vmem:[#allocation2 + $0xd8] sm:$0xff]
    %v91 = vld [vmem:[#allocation2 + $0xe0] sm:$0xff]
    %v92 = vld [vmem:[#allocation2 + $0xe8] sm:$0xff]
    %v93 = vld [vmem:[#allocation2 + $0xf0] sm:$0xff]
    %v94 = vld [vmem:[#allocation2 + $0xf8] sm:$0xff]
    %v95 = vld [vmem:[#allocation2 + $0x100] sm:$0xff]
    %v96 = vld [vmem:[#allocation2 + $0x108] sm:$0xff]
    %v97 = vld [vmem:[#allocation2 + $0x110] sm:$0xff]
    %v98 = vld [vmem:[#allocation2 + $0x118] sm:$0xff]
    %v99 = vld [vmem:[#allocation2 + $0x120] sm:$0xff]
    %v100 = vld [vmem:[#allocation2 + $0x128] sm:$0xff]
    %v101 = vld [vmem:[#allocation2 + $0x130] sm:$0xff]
    %v102 = vld [vmem:[#allocation2 + $0x138] sm:$0xff]
    %v103 = vld [vmem:[#allocation2 + $0x140] sm:$0xff]
    %v104 = vld [vmem:[#allocation2 + $0x148] sm:$0xff]
    %v105 = vld [vmem:[#allocation2 + $0x150] sm:$0xff]
    %v106 = vld [vmem:[#allocation2 + $0x158] sm:$0xff]
    %v107 = vld [vmem:[#allocation2 + $0x160] sm:$0xff]
    %v108 = vld [vmem:[#allocation2 + $0x168] sm:$0xff]
    %v109 = vld [vmem:[#allocation2 + $0x170] sm:$0xff]
    %v110 = vld [vmem:[#allocation2 + $0x178] sm:$0xff]
    %v111 = vld [vmem:[#allocation2 + $0x180] sm:$0xff]
    %v112 = vld [vmem:[#allocation2 + $0x188] sm:$0xff]
    %v113 = vld [vmem:[#allocation2 + $0x190] sm:$0xff]
    %v114 = vld [vmem:[#allocation2 + $0x198] sm:$0xff]
    %v115 = vld [vmem:[#allocation2 + $0x1a0] sm:$0xff]
    %v116 = vld [vmem:[#allocation2 + $0x1a8] sm:$0xff]
    %v117 = vld [vmem:[#allocation2 + $0x1b0] sm:$0xff]
    %v118 = vld [vmem:[#allocation2 + $0x1b8] sm:$0xff]
    %v119 = vld [vmem:[#allocation2 + $0x1c0] sm:$0xff]
    %v120 = vld [vmem:[#allocation2 + $0x1c8] sm:$0xff]
    %v121 = vld [vmem:[#allocation2 + $0x1d0] sm:$0xff]
    %v122 = vld [vmem:[#allocation2 + $0x1d8] sm:$0xff]
    %v123 = vld [vmem:[#allocation2 + $0x1e0] sm:$0xff]
    %v124 = vld [vmem:[#allocation2 + $0x1e8] sm:$0xff]
    %v125 = vld [vmem:[#allocation2 + $0x1f0] sm:$0xff]
    %v126 = vld [vmem:[#allocation2 + $0x1f8] sm:$0xff]
    %v127 = vld [vmem:[#allocation2 + $0x200] sm:$0xff]
    %v128 = vld [vmem:[#allocation2 + $0x208] sm:$0xff]
    %v129 = vld [vmem:[#allocation2 + $0x210] sm:$0xff]
    %v130 = vld [vmem:[#allocation2 + $0x218] sm:$0xff]
    %v131 = vld [vmem:[#allocation2 + $0x220] sm:$0xff]
    %v132 = vld [vmem:[#allocation2 + $0x228] sm:$0xff]
    %v133 = vld [vmem:[#allocation2 + $0x230] sm:$0xff]
    %v134 = vld [vmem:[#allocation2 + $0x238] sm:$0xff]
    %v135 = vld [vmem:[#allocation2 + $0x240] sm:$0xff]
    %v136 = vld [vmem:[#allocation2 + $0x248] sm:$0xff]
    %v137 = vld [vmem:[#allocation2 + $0x250] sm:$0xff]
    %v138 = vld [vmem:[#allocation2 + $0x258] sm:$0xff]
    %v139 = vld [vmem:[#allocation2 + $0x260] sm:$0xff]
    %v140 = vld [vmem:[#allocation2 + $0x268] sm:$0xff]
    %v141 = vld [vmem:[#allocation2 + $0x270] sm:$0xff]
    %v142 = vld [vmem:[#allocation2 + $0x278] sm:$0xff]
    %v143 = vld [vmem:[#allocation2 + $0x280] sm:$0xff]
    %v144 = vld [vmem:[#allocation2 + $0x288] sm:$0xff]
    %v145 = vld [vmem:[#allocation2 + $0x290] sm:$0xff]
    %v146 = vld [vmem:[#allocation2 + $0x298] sm:$0xff]
    %v147 = vld [vmem:[#allocation2 + $0x2a0] sm:$0xff]
    %v148 = vld [vmem:[#allocation2 + $0x2a8] sm:$0xff]
    %v149 = vld [vmem:[#allocation2 + $0x2b0] sm:$0xff]
    %v150 = vld [vmem:[#allocation2 + $0x2b8] sm:$0xff]
    %v151 = vld [vmem:[#allocation2 + $0x2c0] sm:$0xff]
    %v152 = vld [vmem:[#allocation2 + $0x2c8] sm:$0xff]
    %v153 = vld [vmem:[#allocation2 + $0x2d0] sm:$0xff]
    %v154 = vld [vmem:[#allocation2 + $0x2d8] sm:$0xff]
    %v155 = vld [vmem:[#allocation2 + $0x2e0] sm:$0xff]
    %v156 = vld [vmem:[#allocation2 + $0x2e8] sm:$0xff]
    %v157 = vld [vmem:[#allocation2 + $0x2f0] sm:$0xff]
    %v158 = vld [vmem:[#allocation2 + $0x2f8] sm:$0xff]
    %v159 = vld [vmem:[#allocation2 + $0x300] sm:$0xff]
    %v160 = vld [vmem:[#allocation2 + $0x308] sm:$0xff]
    %v161 = vld [vmem:[#allocation2 + $0x310] sm:$0xff]
    %v162 = vld [vmem:[#allocation2 + $0x318] sm:$0xff]
    %v163 = vld [vmem:[#allocation2 + $0x320] sm:$0xff]
    %v164 = vld [vmem:[#allocation2 + $0x328] sm:$0xff]
    %v165 = vld [vmem:[#allocation2 + $0x330] sm:$0xff]
    %v166 = vld [vmem:[#allocation2 + $0x338] sm:$0xff]
    %v167 = vld [vmem:[#allocation2 + $0x340] sm:$0xff]
    %v168 = vld [vmem:[#allocation2 + $0x348] sm:$0xff]
    %v169 = vld [vmem:[#allocation2 + $0x350] sm:$0xff]
    %v170 = vld [vmem:[#allocation2 + $0x358] sm:$0xff]
    %v171 = vld [vmem:[#allocation2 + $0x360] sm:$0xff]
    %v172 = vld [vmem:[#allocation2 + $0x368] sm:$0xff]
    %v173 = vld [vmem:[#allocation2 + $0x370] sm:$0xff]
    %v174 = vld [vmem:[#allocation2 + $0x378] sm:$0xff]
    %v175 = vld [vmem:[#allocation2 + $0x380] sm:$0xff]
    %v176 = vld [vmem:[#allocation2 + $0x388] sm:$0xff]
    %v177 = vld [vmem:[#allocation2 + $0x390] sm:$0xff]
    %v178 = vld [vmem:[#allocation2 + $0x398] sm:$0xff]
    %v179 = vld [vmem:[#allocation2 + $0x3a0] sm:$0xff]
    %v180 = vld [vmem:[#allocation2 + $0x3a8] sm:$0xff]
    %v181 = vld [vmem:[#allocation2 + $0x3b0] sm:$0xff]
    %v182 = vld [vmem:[#allocation2 + $0x3b8] sm:$0xff]
    %v183 = vld [vmem:[#allocation2 + $0x3c0] sm:$0xff]
    %v184 = vld [vmem:[#allocation2 + $0x3c8] sm:$0xff]
    %v185 = vld [vmem:[#allocation2 + $0x3d0] sm:$0xff]
    %v186 = vld [vmem:[#allocation2 + $0x3d8] sm:$0xff]
    %v187 = vld [vmem:[#allocation2 + $0x3e0] sm:$0xff]
    %v188 = vld [vmem:[#allocation2 + $0x3e8] sm:$0xff]
    %v189 = vld [vmem:[#allocation2 + $0x3f0] sm:$0xff]
    %v190 = vld [vmem:[#allocation2 + $0x3f8] sm:$0xff]
    %v191 = vld [vmem:[%s2] sm:$0x1]
    %v193 = vlaneseq
    %v194 = vshrl.u32 %v193, 7
    %v195 = vsub.s32 0, %v194
    %v196 = vrot.slane %v191, %v195
    %v200 = vcombine.high %v61, %v61
    %v202 = vunpack.c.l.s4 1983009808
    %v203 = vunpack.c.0.s8 %v202
    %v204 = vlaneseq
    %v205 = vshrl.u32 %v204, 7
    %v206 = vsub.s32 %v203, %v205
    %v207 = vrot.slane %v61, %v206
    %v209 = vunpack.c.l.s4 1983009808
    %v210 = vunpack.c.0.s8 %v209
    %v211 = vlaneseq
    %v212 = vshrl.u32 %v211, 7
    %v213 = vsub.s32 %v210, %v212
    %v214 = vrot.slane %v200, %v213
    %v215 = vcombine.high %v207, %v207
    %v216 = vcombine.high %v214, %v214
    %v217 = vcombine.high %v62, %v62
    %v219 = vunpack.c.l.s4 1983009808
    %v220 = vunpack.c.0.s8 %v219
    %v221 = vlaneseq
    %v222 = vshrl.u32 %v221, 7
    %v223 = vsub.s32 %v220, %v222
    %v224 = vrot.slane %v62, %v223
    %v226 = vunpack.c.l.s4 1983009808
    %v227 = vunpack.c.0.s8 %v226
    %v228 = vlaneseq
    %v229 = vshrl.u32 %v228, 7
    %v230 = vsub.s32 %v227, %v229
    %v231 = vrot.slane %v217, %v230
    %v232 = vcombine.high %v224, %v224
    %v233 = vcombine.high %v231, %v231
    %242 = vmatprep.subr.mxu0 0.0
    %243 = vmatpush1.msra.mxu0 %v63
    %244 = vmatprep.subr.mxu0 0.0
    %245 = vmatpush1.msra.mxu0 %v64
    %246 = vmatprep.subr.mxu0 0.0
    %247 = vmatpush1.msra.mxu0 %v65
    %248 = vmatprep.subr.mxu0 0.0
    %249 = vmatpush1.msra.mxu0 %v66
    %250 = vmatprep.subr.mxu0 0.0
    %251 = vmatpush1.msra.mxu0 %v67
    %252 = vmatprep.subr.mxu0 0.0
    %253 = vmatpush1.msra.mxu0 %v68
    %254 = vmatprep.subr.mxu0 0.0
    %255 = vmatpush1.msra.mxu0 %v69
    %256 = vmatprep.subr.mxu0 0.0
    %257 = vmatpush1.msra.mxu0 %v70
    %258 = vmatprep.subr.mxu0 0.0
    %259 = vmatpush1.msra.mxu0 %v71
    %260 = vmatprep.subr.mxu0 0.0
    %261 = vmatpush1.msra.mxu0 %v72
    %262 = vmatprep.subr.mxu0 0.0
    %263 = vmatpush1.msra.mxu0 %v73
    %264 = vmatprep.subr.mxu0 0.0
    %265 = vmatpush1.msra.mxu0 %v74
    %266 = vmatprep.subr.mxu0 0.0
    %267 = vmatpush1.msra.mxu0 %v75
    %268 = vmatprep.subr.mxu0 0.0
    %269 = vmatpush1.msra.mxu0 %v76
    %270 = vmatprep.subr.mxu0 0.0
    %271 = vmatpush1.msra.mxu0 %v77
    %272 = vmatprep.subr.mxu0 0.0
    %273 = vmatpush1.msra.mxu0 %v78
    %274 = vmatprep.subr.mxu0 0.0
    %275 = vmatpush1.msra.mxu0 %v79
    %276 = vmatprep.subr.mxu0 0.0
    %277 = vmatpush1.msra.mxu0 %v80
    %278 = vmatprep.subr.mxu0 0.0
    %279 = vmatpush1.msra.mxu0 %v81
    %280 = vmatprep.subr.mxu0 0.0
    %281 = vmatpush1.msra.mxu0 %v82
    %282 = vmatprep.subr.mxu0 0.0
    %283 = vmatpush1.msra.mxu0 %v83
    %284 = vmatprep.subr.mxu0 0.0
    %285 = vmatpush1.msra.mxu0 %v84
    %286 = vmatprep.subr.mxu0 0.0
    %287 = vmatpush1.msra.mxu0 %v85
    %288 = vmatprep.subr.mxu0 0.0
    %289 = vmatpush1.msra.mxu0 %v86
    %290 = vmatprep.subr.mxu0 0.0
    %291 = vmatpush1.msra.mxu0 %v87
    %292 = vmatprep.subr.mxu0 0.0
    %293 = vmatpush1.msra.mxu0 %v88
    %294 = vmatprep.subr.mxu0 0.0
    %295 = vmatpush1.msra.mxu0 %v89
    %296 = vmatprep.subr.mxu0 0.0
    %297 = vmatpush1.msra.mxu0 %v90
    %298 = vmatprep.subr.mxu0 0.0
    %299 = vmatpush1.msra.mxu0 %v91
    %300 = vmatprep.subr.mxu0 0.0
    %301 = vmatpush1.msra.mxu0 %v92
    %302 = vmatprep.subr.mxu0 0.0
    %303 = vmatpush1.msra.mxu0 %v93
    %304 = vmatprep.subr.mxu0 0.0
    %305 = vmatpush1.msra.mxu0 %v94
    %306 = vmatprep.mubr.f32.mxu0 %v215
    %307 = vmatmul.mubr.f32.gmra.mrb[0].mxu0 %v207
    %v308 = vpop.f32.mrb[0].mxu0
    %v309 = vadd.f32 %v196, %v308
    %v310 = vpop.f32.mrb[0].mxu0
    %311 = vdwg.mxu0
    %312 = vmatprep.subr.mxu0 0.0
    %313 = vmatpush1.msra.mxu0 %v95
    %314 = vmatprep.subr.mxu0 0.0
    %315 = vmatpush1.msra.mxu0 %v96
    %316 = vmatprep.subr.mxu0 0.0
    %317 = vmatpush1.msra.mxu0 %v97
    %318 = vmatprep.subr.mxu0 0.0
    %319 = vmatpush1.msra.mxu0 %v98
    %320 = vmatprep.subr.mxu0 0.0
    %321 = vmatpush1.msra.mxu0 %v99
    %322 = vmatprep.subr.mxu0 0.0
    %323 = vmatpush1.msra.mxu0 %v100
    %324 = vmatprep.subr.mxu0 0.0
    %325 = vmatpush1.msra.mxu0 %v101
    %326 = vmatprep.subr.mxu0 0.0
    %327 = vmatpush1.msra.mxu0 %v102
    %328 = vmatprep.subr.mxu0 0.0
    %329 = vmatpush1.msra.mxu0 %v103
    %330 = vmatprep.subr.mxu0 0.0
    %331 = vmatpush1.msra.mxu0 %v104
    %332 = vmatprep.subr.mxu0 0.0
    %333 = vmatpush1.msra.mxu0 %v105
    %334 = vmatprep.subr.mxu0 0.0
    %335 = vmatpush1.msra.mxu0 %v106
    %336 = vmatprep.subr.mxu0 0.0
    %337 = vmatpush1.msra.mxu0 %v107
    %338 = vmatprep.subr.mxu0 0.0
    %339 = vmatpush1.msra.mxu0 %v108
    %340 = vmatprep.subr.mxu0 0.0
    %341 = vmatpush1.msra.mxu0 %v109
    %342 = vmatprep.subr.mxu0 0.0
    %343 = vmatpush1.msra.mxu0 %v110
    %344 = vmatprep.subr.mxu0 0.0
    %345 = vmatpush1.msra.mxu0 %v111
    %346 = vmatprep.subr.mxu0 0.0
    %347 = vmatpush1.msra.mxu0 %v112
    %348 = vmatprep.subr.mxu0 0.0
    %349 = vmatpush1.msra.mxu0 %v113
    %350 = vmatprep.subr.mxu0 0.0
    %351 = vmatpush1.msra.mxu0 %v114
    %352 = vmatprep.subr.mxu0 0.0
    %353 = vmatpush1.msra.mxu0 %v115
    %354 = vmatprep.subr.mxu0 0.0
    %355 = vmatpush1.msra.mxu0 %v116
    %356 = vmatprep.subr.mxu0 0.0
    %357 = vmatpush1.msra.mxu0 %v117
    %358 = vmatprep.subr.mxu0 0.0
    %359 = vmatpush1.msra.mxu0 %v118
    %360 = vmatprep.subr.mxu0 0.0
    %361 = vmatpush1.msra.mxu0 %v119
    %362 = vmatprep.subr.mxu0 0.0
    %363 = vmatpush1.msra.mxu0 %v120
    %364 = vmatprep.subr.mxu0 0.0
    %365 = vmatpush1.msra.mxu0 %v121
    %366 = vmatprep.subr.mxu0 0.0
    %367 = vmatpush1.msra.mxu0 %v122
    %368 = vmatprep.subr.mxu0 0.0
    %369 = vmatpush1.msra.mxu0 %v123
    %370 = vmatprep.subr.mxu0 0.0
    %371 = vmatpush1.msra.mxu0 %v124
    %372 = vmatprep.subr.mxu0 0.0
    %373 = vmatpush1.msra.mxu0 %v125
    %374 = vmatprep.subr.mxu0 0.0
    %375 = vmatpush1.msra.mxu0 %v126
    %376 = vmatprep.mubr.f32.mxu0 %v216
    %377 = vmatmul.mubr.f32.gmra.mrb[0].mxu0 %v214
    %v378 = vpop.f32.mrb[0].mxu0
    %v379 = vadd.f32 %v309, %v378
    %v380 = vpop.f32.mrb[0].mxu0
    %381 = vdwg.mxu0
    %382 = vmatprep.subr.mxu0 0.0
    %383 = vmatpush1.msra.mxu0 %v127
    %384 = vmatprep.subr.mxu0 0.0
    %385 = vmatpush1.msra.mxu0 %v128
    %386 = vmatprep.subr.mxu0 0.0
    %387 = vmatpush1.msra.mxu0 %v129
    %388 = vmatprep.subr.mxu0 0.0
    %389 = vmatpush1.msra.mxu0 %v130
    %390 = vmatprep.subr.mxu0 0.0
    %391 = vmatpush1.msra.mxu0 %v131
    %392 = vmatprep.subr.mxu0 0.0
    %393 = vmatpush1.msra.mxu0 %v132
    %394 = vmatprep.subr.mxu0 0.0
    %395 = vmatpush1.msra.mxu0 %v133
    %396 = vmatprep.subr.mxu0 0.0
    %397 = vmatpush1.msra.mxu0 %v134
    %398 = vmatprep.subr.mxu0 0.0
    %399 = vmatpush1.msra.mxu0 %v135
    %400 = vmatprep.subr.mxu0 0.0
    %401 = vmatpush1.msra.mxu0 %v136
    %402 = vmatprep.subr.mxu0 0.0
    %403 = vmatpush1.msra.mxu0 %v137
    %404 = vmatprep.subr.mxu0 0.0
    %405 = vmatpush1.msra.mxu0 %v138
    %406 = vmatprep.subr.mxu0 0.0
    %407 = vmatpush1.msra.mxu0 %v139
    %408 = vmatprep.subr.mxu0 0.0
    %409 = vmatpush1.msra.mxu0 %v140
    %410 = vmatprep.subr.mxu0 0.0
    %411 = vmatpush1.msra.mxu0 %v141
    %412 = vmatprep.subr.mxu0 0.0
    %413 = vmatpush1.msra.mxu0 %v142
    %414 = vmatprep.subr.mxu0 0.0
    %415 = vmatpush1.msra.mxu0 %v143
    %416 = vmatprep.subr.mxu0 0.0
    %417 = vmatpush1.msra.mxu0 %v144
    %418 = vmatprep.subr.mxu0 0.0
    %419 = vmatpush1.msra.mxu0 %v145
    %420 = vmatprep.subr.mxu0 0.0
    %421 = vmatpush1.msra.mxu0 %v146
    %422 = vmatprep.subr.mxu0 0.0
    %423 = vmatpush1.msra.mxu0 %v147
    %424 = vmatprep.subr.mxu0 0.0
    %425 = vmatpush1.msra.mxu0 %v148
    %426 = vmatprep.subr.mxu0 0.0
    %427 = vmatpush1.msra.mxu0 %v149
    %428 = vmatprep.subr.mxu0 0.0
    %429 = vmatpush1.msra.mxu0 %v150
    %430 = vmatprep.subr.mxu0 0.0
    %431 = vmatpush1.msra.mxu0 %v151
    %432 = vmatprep.subr.mxu0 0.0
    %433 = vmatpush1.msra.mxu0 %v152
    %434 = vmatprep.subr.mxu0 0.0
    %435 = vmatpush1.msra.mxu0 %v153
    %436 = vmatprep.subr.mxu0 0.0
    %437 = vmatpush1.msra.mxu0 %v154
    %438 = vmatprep.subr.mxu0 0.0
    %439 = vmatpush1.msra.mxu0 %v155
    %440 = vmatprep.subr.mxu0 0.0
    %441 = vmatpush1.msra.mxu0 %v156
    %442 = vmatprep.subr.mxu0 0.0
    %443 = vmatpush1.msra.mxu0 %v157
    %444 = vmatprep.subr.mxu0 0.0
    %445 = vmatpush1.msra.mxu0 %v158
    %446 = vmatprep.mubr.f32.mxu0 %v232
    %447 = vmatmul.mubr.f32.gmra.mrb[0].mxu0 %v224
    %v448 = vpop.f32.mrb[0].mxu0
    %v449 = vadd.f32 %v379, %v448
    %v450 = vpop.f32.mrb[0].mxu0
    %451 = vdwg.mxu0
    %452 = vmatprep.subr.mxu0 0.0
    %453 = vmatpush1.msra.mxu0 %v159
    %454 = vmatprep.subr.mxu0 0.0
    %455 = vmatpush1.msra.mxu0 %v160
    %456 = vmatprep.subr.mxu0 0.0
    %457 = vmatpush1.msra.mxu0 %v161
    %458 = vmatprep.subr.mxu0 0.0
    %459 = vmatpush1.msra.mxu0 %v162
    %460 = vmatprep.subr.mxu0 0.0
    %461 = vmatpush1.msra.mxu0 %v163
    %462 = vmatprep.subr.mxu0 0.0
    %463 = vmatpush1.msra.mxu0 %v164
    %464 = vmatprep.subr.mxu0 0.0
    %465 = vmatpush1.msra.mxu0 %v165
    %466 = vmatprep.subr.mxu0 0.0
    %467 = vmatpush1.msra.mxu0 %v166
    %468 = vmatprep.subr.mxu0 0.0
    %469 = vmatpush1.msra.mxu0 %v167
    %470 = vmatprep.subr.mxu0 0.0
    %471 = vmatpush1.msra.mxu0 %v168
    %472 = vmatprep.subr.mxu0 0.0
    %473 = vmatpush1.msra.mxu0 %v169
    %474 = vmatprep.subr.mxu0 0.0
    %475 = vmatpush1.msra.mxu0 %v170
    %476 = vmatprep.subr.mxu0 0.0
    %477 = vmatpush1.msra.mxu0 %v171
    %478 = vmatprep.subr.mxu0 0.0
    %479 = vmatpush1.msra.mxu0 %v172
    %480 = vmatprep.subr.mxu0 0.0
    %481 = vmatpush1.msra.mxu0 %v173
    %482 = vmatprep.subr.mxu0 0.0
    %483 = vmatpush1.msra.mxu0 %v174
    %484 = vmatprep.subr.mxu0 0.0
    %485 = vmatpush1.msra.mxu0 %v175
    %486 = vmatprep.subr.mxu0 0.0
    %487 = vmatpush1.msra.mxu0 %v176
    %488 = vmatprep.subr.mxu0 0.0
    %489 = vmatpush1.msra.mxu0 %v177
    %490 = vmatprep.subr.mxu0 0.0
    %491 = vmatpush1.msra.mxu0 %v178
    %492 = vmatprep.subr.mxu0 0.0
    %493 = vmatpush1.msra.mxu0 %v179
    %494 = vmatprep.subr.mxu0 0.0
    %495 = vmatpush1.msra.mxu0 %v180
    %496 = vmatprep.subr.mxu0 0.0
    %497 = vmatpush1.msra.mxu0 %v181
    %498 = vmatprep.subr.mxu0 0.0
    %499 = vmatpush1.msra.mxu0 %v182
    %500 = vmatprep.subr.mxu0 0.0
    %501 = vmatpush1.msra.mxu0 %v183
    %502 = vmatprep.subr.mxu0 0.0
    %503 = vmatpush1.msra.mxu0 %v184
    %504 = vmatprep.subr.mxu0 0.0
    %505 = vmatpush1.msra.mxu0 %v185
    %506 = vmatprep.subr.mxu0 0.0
    %507 = vmatpush1.msra.mxu0 %v186
    %508 = vmatprep.subr.mxu0 0.0
    %509 = vmatpush1.msra.mxu0 %v187
    %510 = vmatprep.subr.mxu0 0.0
    %511 = vmatpush1.msra.mxu0 %v188
    %512 = vmatprep.subr.mxu0 0.0
    %513 = vmatpush1.msra.mxu0 %v189
    %514 = vmatprep.subr.mxu0 0.0
    %515 = vmatpush1.msra.mxu0 %v190
    %516 = vmatprep.mubr.f32.mxu0 %v233
    %517 = vmatmul.mubr.f32.gmra.mrb[0].mxu0 %v231
    %v518 = vpop.f32.mrb[0].mxu0
    %v519 = vadd.f32 %v449, %v518
    %v520 = vpop.f32.mrb[0].mxu0
    %521 = vdwg.mxu0
    %v522 = vmax.f32 %v519, 0.0
    %v523 = vld [vmem:[%s3] sm:$0xff]
    %v524 = vld [vmem:[%s3 + $0x8] sm:$0xff]
    %v525 = vld [vmem:[%s3 + $0x10] sm:$0xff]
    %v526 = vld [vmem:[%s3 + $0x18] sm:$0xff]
    %v527 = vld [vmem:[%s3 + $0x20] sm:$0xff]
    %v528 = vld [vmem:[%s3 + $0x28] sm:$0xff]
    %v529 = vld [vmem:[%s3 + $0x30] sm:$0xff]
    %v530 = vld [vmem:[%s3 + $0x38] sm:$0xff]
    %v531 = vld [vmem:[%s3 + $0x40] sm:$0xff]
    %v532 = vld [vmem:[%s3 + $0x48] sm:$0xff]
    %v533 = vld [vmem:[%s3 + $0x50] sm:$0xff]
    %v534 = vld [vmem:[%s3 + $0x58] sm:$0xff]
    %v535 = vld [vmem:[%s3 + $0x60] sm:$0xff]
    %v536 = vld [vmem:[%s3 + $0x68] sm:$0xff]
    %v537 = vld [vmem:[%s3 + $0x70] sm:$0xff]
    %v538 = vld [vmem:[%s3 + $0x78] sm:$0xff]
    %v539 = vld [vmem:[%s4] sm:$0x1]
    %v541 = vlaneseq
    %v542 = vshrl.u32 %v541, 7
    %v543 = vsub.s32 0, %v542
    %v544 = vrot.slane %v539, %v543
    %546 = vmatprep.subr.mxu0 0.0
    %547 = vmatpush1.msra.mxu0 %v523
    %548 = vmatprep.subr.mxu0 0.0
    %549 = vmatpush1.msra.mxu0 %v524
    %550 = vmatprep.subr.mxu0 0.0
    %551 = vmatpush1.msra.mxu0 %v525
    %552 = vmatprep.subr.mxu0 0.0
    %553 = vmatpush1.msra.mxu0 %v526
    %554 = vmatprep.subr.mxu0 0.0
    %555 = vmatpush1.msra.mxu0 %v527
    %556 = vmatprep.subr.mxu0 0.0
    %557 = vmatpush1.msra.mxu0 %v528
    %558 = vmatprep.subr.mxu0 0.0
    %559 = vmatpush1.msra.mxu0 %v529
    %560 = vmatprep.subr.mxu0 0.0
    %561 = vmatpush1.msra.mxu0 %v530
    %562 = vmatprep.subr.mxu0 0.0
    %563 = vmatpush1.msra.mxu0 %v531
    %564 = vmatprep.subr.mxu0 0.0
    %565 = vmatpush1.msra.mxu0 %v532
    %566 = vmatprep.subr.mxu0 0.0
    %567 = vmatpush1.msra.mxu0 %v533
    %568 = vmatprep.subr.mxu0 0.0
    %569 = vmatpush1.msra.mxu0 %v534
    %570 = vmatprep.subr.mxu0 0.0
    %571 = vmatpush1.msra.mxu0 %v535
    %572 = vmatprep.subr.mxu0 0.0
    %573 = vmatpush1.msra.mxu0 %v536
    %574 = vmatprep.subr.mxu0 0.0
    %575 = vmatpush1.msra.mxu0 %v537
    %576 = vmatprep.subr.mxu0 0.0
    %577 = vmatpush1.msra.mxu0 %v538
    %578 = vmatprep.subr.mxu0 0.0
    %579 = vmatpush1.msra.mxu0 0.0
    %580 = vmatprep.subr.mxu0 0.0
    %581 = vmatpush1.msra.mxu0 0.0
    %582 = vmatprep.subr.mxu0 0.0
    %583 = vmatpush1.msra.mxu0 0.0
    %584 = vmatprep.subr.mxu0 0.0
    %585 = vmatpush1.msra.mxu0 0.0
    %586 = vmatprep.subr.mxu0 0.0
    %587 = vmatpush1.msra.mxu0 0.0
    %588 = vmatprep.subr.mxu0 0.0
    %589 = vmatpush1.msra.mxu0 0.0
    %590 = vmatprep.subr.mxu0 0.0
    %591 = vmatpush1.msra.mxu0 0.0
    %592 = vmatprep.subr.mxu0 0.0
    %593 = vmatpush1.msra.mxu0 0.0
    %594 = vmatprep.subr.mxu0 0.0
    %595 = vmatpush1.msra.mxu0 0.0
    %596 = vmatprep.subr.mxu0 0.0
    %597 = vmatpush1.msra.mxu0 0.0
    %598 = vmatprep.subr.mxu0 0.0
    %599 = vmatpush1.msra.mxu0 0.0
    %600 = vmatprep.subr.mxu0 0.0
    %601 = vmatpush1.msra.mxu0 0.0
    %602 = vmatprep.subr.mxu0 0.0
    %603 = vmatpush1.msra.mxu0 0.0
    %604 = vmatprep.subr.mxu0 0.0
    %605 = vmatpush1.msra.mxu0 0.0
    %606 = vmatprep.subr.mxu0 0.0
    %607 = vmatpush1.msra.mxu0 0.0
    %608 = vmatprep.subr.mxu0 0.0
    %609 = vmatpush1.msra.mxu0 0.0
    %610 = vmatprep.mubr.f32.mxu0 0.0
    %611 = vmatmul.mubr.f32.gmra.mrb[0].mxu0 %v522
    %v612 = vpop.f32.mrb[0].mxu0
    %v613 = vadd.f32 %v544, %v612
    %v614 = vpop.f32.mrb[0].mxu0
    %615 = vdwg.mxu0
    %v616 = vmax.f32 %v613, 0.0
    %v617 = vld [vmem:[#allocation5] sm:$0xff]
    %v618 = vld [vmem:[#allocation5 + $0x8] sm:$0xff]
    %v619 = vld [vmem:[#allocation5 + $0x10] sm:$0xff]
    %v620 = vld [vmem:[#allocation5 + $0x18] sm:$0xff]
    %v621 = vld [vmem:[#allocation5 + $0x20] sm:$0xff]
    %v622 = vld [vmem:[#allocation5 + $0x28] sm:$0xff]
    %v623 = vld [vmem:[#allocation5 + $0x30] sm:$0xff]
    %v624 = vld [vmem:[#allocation5 + $0x38] sm:$0xff]
    %v625 = vld [vmem:[#allocation5 + $0x40] sm:$0xff]
    %v626 = vld [vmem:[#allocation5 + $0x48] sm:$0xff]
    %v627 = vld [vmem:[#allocation5 + $0x50] sm:$0xff]
    %v628 = vld [vmem:[#allocation5 + $0x58] sm:$0xff]
    %v629 = vld [vmem:[#allocation5 + $0x60] sm:$0xff]
    %v630 = vld [vmem:[#allocation5 + $0x68] sm:$0xff]
    %v631 = vld [vmem:[#allocation5 + $0x70] sm:$0xff]
    %v632 = vld [vmem:[#allocation5 + $0x78] sm:$0xff]
    %v633 = vld [vmem:[%s6] sm:$0x1]
    %v635 = vlaneseq
    %v636 = vshrl.u32 %v635, 7
    %v637 = vsub.s32 0, %v636
    %v638 = vrot.slane %v633, %v637
    %640 = vmatprep.subr.mxu0 0.0
    %641 = vmatpush1.msra.mxu0 %v617
    %642 = vmatprep.subr.mxu0 0.0
    %643 = vmatpush1.msra.mxu0 %v618
    %644 = vmatprep.subr.mxu0 0.0
    %645 = vmatpush1.msra.mxu0 %v619
    %646 = vmatprep.subr.mxu0 0.0
    %647 = vmatpush1.msra.mxu0 %v620
    %648 = vmatprep.subr.mxu0 0.0
    %649 = vmatpush1.msra.mxu0 %v621
    %650 = vmatprep.subr.mxu0 0.0
    %651 = vmatpush1.msra.mxu0 %v622
    %652 = vmatprep.subr.mxu0 0.0
    %653 = vmatpush1.msra.mxu0 %v623
    %654 = vmatprep.subr.mxu0 0.0
    %655 = vmatpush1.msra.mxu0 %v624
    %656 = vmatprep.subr.mxu0 0.0
    %657 = vmatpush1.msra.mxu0 %v625
    %658 = vmatprep.subr.mxu0 0.0
    %659 = vmatpush1.msra.mxu0 %v626
    %660 = vmatprep.subr.mxu0 0.0
    %661 = vmatpush1.msra.mxu0 %v627
    %662 = vmatprep.subr.mxu0 0.0
    %663 = vmatpush1.msra.mxu0 %v628
    %664 = vmatprep.subr.mxu0 0.0
    %665 = vmatpush1.msra.mxu0 %v629
    %666 = vmatprep.subr.mxu0 0.0
    %667 = vmatpush1.msra.mxu0 %v630
    %668 = vmatprep.subr.mxu0 0.0
    %669 = vmatpush1.msra.mxu0 %v631
    %670 = vmatprep.subr.mxu0 0.0
    %671 = vmatpush1.msra.mxu0 %v632
    %672 = vmatprep.subr.mxu0 0.0
    %673 = vmatpush1.msra.mxu0 0.0
    %674 = vmatprep.subr.mxu0 0.0
    %675 = vmatpush1.msra.mxu0 0.0
    %676 = vmatprep.subr.mxu0 0.0
    %677 = vmatpush1.msra.mxu0 0.0
    %678 = vmatprep.subr.mxu0 0.0
    %679 = vmatpush1.msra.mxu0 0.0
    %680 = vmatprep.subr.mxu0 0.0
    %681 = vmatpush1.msra.mxu0 0.0
    %682 = vmatprep.subr.mxu0 0.0
    %683 = vmatpush1.msra.mxu0 0.0
    %684 = vmatprep.subr.mxu0 0.0
    %685 = vmatpush1.msra.mxu0 0.0
    %686 = vmatprep.subr.mxu0 0.0
    %687 = vmatpush1.msra.mxu0 0.0
    %688 = vmatprep.subr.mxu0 0.0
    %689 = vmatpush1.msra.mxu0 0.0
    %690 = vmatprep.subr.mxu0 0.0
    %691 = vmatpush1.msra.mxu0 0.0
    %692 = vmatprep.subr.mxu0 0.0
    %693 = vmatpush1.msra.mxu0 0.0
    %694 = vmatprep.subr.mxu0 0.0
    %695 = vmatpush1.msra.mxu0 0.0
    %696 = vmatprep.subr.mxu0 0.0
    %697 = vmatpush1.msra.mxu0 0.0
    %698 = vmatprep.subr.mxu0 0.0
    %699 = vmatpush1.msra.mxu0 0.0
    %700 = vmatprep.subr.mxu0 0.0
    %701 = vmatpush1.msra.mxu0 0.0
    %702 = vmatprep.subr.mxu0 0.0
    %703 = vmatpush1.msra.mxu0 0.0
    %704 = vmatprep.mubr.f32.mxu0 0.0
    %705 = vmatmul.mubr.f32.gmra.mrb[0].mxu0 %v616
    %v706 = vpop.f32.mrb[0].mxu0
    %v707 = vadd.f32 %v638, %v706
    %v708 = vpop.f32.mrb[0].mxu0
    %709 = vdwg.mxu0
    %v710 = vmax.f32 %v707, 0.0
    %v711 = vld [vmem:[%s7] sm:$0xff]
    %v712 = vld [vmem:[%s7 + $0x8] sm:$0xff]
    %v713 = vld [vmem:[%s7 + $0x10] sm:$0xff]
    %v714 = vld [vmem:[%s7 + $0x18] sm:$0xff]
    %v715 = vld [vmem:[%s7 + $0x20] sm:$0xff]
    %v716 = vld [vmem:[%s7 + $0x28] sm:$0xff]
    %v717 = vld [vmem:[%s7 + $0x30] sm:$0xff]
    %v718 = vld [vmem:[%s7 + $0x38] sm:$0xff]
    %v719 = vld [vmem:[%s7 + $0x40] sm:$0xff]
    %v720 = vld [vmem:[%s7 + $0x48] sm:$0xff]
    %v721 = vld [vmem:[%s7 + $0x50] sm:$0xff]
    %v722 = vld [vmem:[%s7 + $0x58] sm:$0xff]
    %v723 = vld [vmem:[%s7 + $0x60] sm:$0xff]
    %v724 = vld [vmem:[%s7 + $0x68] sm:$0xff]
    %v725 = vld [vmem:[%s7 + $0x70] sm:$0xff]
    %v726 = vld [vmem:[%s7 + $0x78] sm:$0xff]
    %v727 = vld [vmem:[%s8] sm:$0x1]
    %v729 = vlaneseq
    %v730 = vshrl.u32 %v729, 7
    %v731 = vsub.s32 0, %v730
    %v732 = vrot.slane %v727, %v731
    %734 = vmatprep.subr.mxu0 0.0
    %735 = vmatpush1.msra.mxu0 %v711
    %736 = vmatprep.subr.mxu0 0.0
    %737 = vmatpush1.msra.mxu0 %v712
    %738 = vmatprep.subr.mxu0 0.0
    %739 = vmatpush1.msra.mxu0 %v713
    %740 = vmatprep.subr.mxu0 0.0
    %741 = vmatpush1.msra.mxu0 %v714
    %742 = vmatprep.subr.mxu0 0.0
    %743 = vmatpush1.msra.mxu0 %v715
    %744 = vmatprep.subr.mxu0 0.0
    %745 = vmatpush1.msra.mxu0 %v716
    %746 = vmatprep.subr.mxu0 0.0
    %747 = vmatpush1.msra.mxu0 %v717
    %748 = vmatprep.subr.mxu0 0.0
    %749 = vmatpush1.msra.mxu0 %v718
    %750 = vmatprep.subr.mxu0 0.0
    %751 = vmatpush1.msra.mxu0 %v719
    %752 = vmatprep.subr.mxu0 0.0
    %753 = vmatpush1.msra.mxu0 %v720
    %754 = vmatprep.subr.mxu0 0.0
    %755 = vmatpush1.msra.mxu0 %v721
    %756 = vmatprep.subr.mxu0 0.0
    %757 = vmatpush1.msra.mxu0 %v722
    %758 = vmatprep.subr.mxu0 0.0
    %759 = vmatpush1.msra.mxu0 %v723
    %760 = vmatprep.subr.mxu0 0.0
    %761 = vmatpush1.msra.mxu0 %v724
    %762 = vmatprep.subr.mxu0 0.0
    %763 = vmatpush1.msra.mxu0 %v725
    %764 = vmatprep.subr.mxu0 0.0
    %765 = vmatpush1.msra.mxu0 %v726
    %766 = vmatprep.subr.mxu0 0.0
    %767 = vmatpush1.msra.mxu0 0.0
    %768 = vmatprep.subr.mxu0 0.0
    %769 = vmatpush1.msra.mxu0 0.0
    %770 = vmatprep.subr.mxu0 0.0
    %771 = vmatpush1.msra.mxu0 0.0
    %772 = vmatprep.subr.mxu0 0.0
    %773 = vmatpush1.msra.mxu0 0.0
    %774 = vmatprep.subr.mxu0 0.0
    %775 = vmatpush1.msra.mxu0 0.0
    %776 = vmatprep.subr.mxu0 0.0
    %777 = vmatpush1.msra.mxu0 0.0
    %778 = vmatprep.subr.mxu0 0.0
    %779 = vmatpush1.msra.mxu0 0.0
    %780 = vmatprep.subr.mxu0 0.0
    %781 = vmatpush1.msra.mxu0 0.0
    %782 = vmatprep.subr.mxu0 0.0
    %783 = vmatpush1.msra.mxu0 0.0
    %784 = vmatprep.subr.mxu0 0.0
    %785 = vmatpush1.msra.mxu0 0.0
    %786 = vmatprep.subr.mxu0 0.0
    %787 = vmatpush1.msra.mxu0 0.0
    %788 = vmatprep.subr.mxu0 0.0
    %789 = vmatpush1.msra.mxu0 0.0
    %790 = vmatprep.subr.mxu0 0.0
    %791 = vmatpush1.msra.mxu0 0.0
    %792 = vmatprep.subr.mxu0 0.0
    %793 = vmatpush1.msra.mxu0 0.0
    %794 = vmatprep.subr.mxu0 0.0
    %795 = vmatpush1.msra.mxu0 0.0
    %796 = vmatprep.subr.mxu0 0.0
    %797 = vmatpush1.msra.mxu0 0.0
    %798 = vmatprep.mubr.f32.mxu0 0.0
    %799 = vmatmul.mubr.f32.gmra.mrb[0].mxu0 %v710
    %v800 = vpop.f32.mrb[0].mxu0
    %v801 = vadd.f32 %v732, %v800
    %v802 = vpop.f32.mrb[0].mxu0
    %803 = vdwg.mxu0
    %vm804 = vcmask 74752
    %805 = vst.msk [vmem:[#allocation7] sm:$0x3] %vm804, %v801
    // Predicated region
    $region46: #{tpu_custom_call.1} parent=1 // pred_check
      _
    $region47: #{tpu_custom_call.1} parent=1 // pred_check_branch
      %807 = sbr.rel (0) target = $region49
    $region48: #{tpu_custom_call.1} parent=1 // pred_region
      %s809 = ssub.s32 32, 32
      %810 = vsyncadd [#allocation4], %s809
      %s812 = sshll.u32 [#allocation7], 4
      %s813 = int_to_ptr.vmem [resolvable:$true] %s812
      %815 = dma.vmem_to_hbm [thread:$0]  %s813, 32, %s9, [#allocation4]
    $region49: #{tpu_custom_call.1} parent=1 // pred_fallthru
      _
    // Predicated region
    $region50: #{tpu_custom_call.1} parent=1 // pred_check
      _
    $region51: #{tpu_custom_call.1} parent=1 // pred_check_branch
      %817 = sbr.rel (0) target = $region53
    $region52: #{tpu_custom_call.1} parent=1 // pred_region
      %818 = dma.done [#allocation4], 32
    $region53: #{tpu_custom_call.1} parent=1 // pred_fallthru
      _
    %819 = vsyncpa [#allocation3], 1
    %820 = vsyncpa [#allocation6], 1
    %821 = vsyncpa [#allocation4], 1

</llo_original>
